<compile_context>
chip_gen: v5e
topology: v5e:2x2
jax: 0.10.0
libtpu: 0.0.40
codegen_flags: <defaults>
</compile_context>

<pallas_src>
import functools

import jax
import jax.numpy as jnp
from jax.experimental import pallas as pl
from jax.experimental.pallas import tpu as pltpu

MIN_VALUE = 0.09141536261538462
MAX_VALUE = 0.8849892864070107


def center_crop(x, crop_h, crop_w):
    """TF.center_crop equivalent for NCHW (pure-JAX reference only)."""
    H, W = x.shape[-2], x.shape[-1]
    top = int(round((H - crop_h) / 2.0))
    left = int(round((W - crop_w) / 2.0))
    return x[..., top:top + crop_h, left:left + crop_w]


def _num_tensorcores():
    """Best-effort TensorCores per chip: 2 on v7x, 1 on v5e/v6e."""
    try:
        kind = jax.devices()[0].device_kind.lower()
    except Exception:
        return 1
    return 2 if "v7" in kind else 1


def _weighted_loss_kernel(pred_ref, tgt_ref, out_ref, *,
                          min_value, max_value,
                          bc_total, bc_tile, chunks_per_core, needs_mask):
    c = pl.program_id(0)          # TensorCore split axis
    i = pl.program_id(1)          # chunk within this core (reduction axis)

    @pl.when(i == 0)
    def _():
        out_ref[...] = jnp.zeros_like(out_ref)

    p = pred_ref[...].astype(jnp.float32)
    t = tgt_ref[...].astype(jnp.float32)
    val = jnp.abs(p - t) * jnp.clip(t, min_value, max_value)

    if not needs_mask:
        # Common case: every chunk is full -> zero masking work.
        out_ref[...] += jnp.sum(val, axis=0, keepdims=True)
    else:
        chunk_idx = c * chunks_per_core + i          # unclamped logical index
        n_valid = bc_total - chunk_idx * bc_tile
        is_full = n_valid >= bc_tile

        @pl.when(is_full)
        def _():
            out_ref[...] += jnp.sum(val, axis=0, keepdims=True)

        @pl.when(jnp.logical_not(is_full))
        def _():
            # Slim select-based mask; only the partial last chunk and a possible
            # phantom chunk (odd chunk count split over 2 cores) take this path.
            # Keep it select-based: the out-of-range planes come from an
            # unchecked DMA and may hold NaN/Inf garbage.
            bc_idx = jax.lax.broadcasted_iota(
                jnp.int32, (val.shape[0], 1, 1), 0)
            masked = jnp.where(bc_idx < n_valid, val, 0.0)
            out_ref[...] += jnp.sum(masked, axis=0, keepdims=True)


def weighted_loss(pred, target, crop_size=336 - 48,
                  min_value=MIN_VALUE, max_value=MAX_VALUE,
                  block_bytes=4 << 20):
    assert pred.shape == target.shape and pred.ndim == 4
    B, C, H, W = pred.shape
    crop_h = crop_w = int(crop_size)
    assert crop_h <= H and crop_w <= W
    top = int(round((H - crop_h) / 2.0))
    left = int(round((W - crop_w) / 2.0))
    BC = B * C
    count = BC * crop_h * crop_w

    # Free (contiguous) reshape: fold batch & channel into one leading axis.
    p3 = pred.reshape(BC, H, W)
    t3 = target.reshape(BC, H, W)

    # ~4 MiB per input block (double-buffered by the Pallas pipeline).
    itemsize = pred.dtype.itemsize
    bc_cap = max(1, min(BC, block_bytes // (H * W * itemsize)))
    # Prefer a divisor of BC (no partial tail chunk -> no masking at all),
    # unless the best divisor shrinks the block by more than 2x.
    bc_tile = bc_cap
    for cand in range(bc_cap, 0, -1):
        if BC % cand == 0:
            bc_tile = cand
            break
    if bc_tile < max(1, bc_cap // 2):
        bc_tile = bc_cap

    chunks_total = pl.cdiv(BC, bc_tile)
    num_cores = _num_tensorcores() if chunks_total >= 2 else 1
    chunks_per_core = pl.cdiv(chunks_total, num_cores)
    needs_mask = (BC % bc_tile != 0) or (num_cores * chunks_per_core != chunks_total)

    kernel = functools.partial(
        _weighted_loss_kernel,
        min_value=float(min_value), max_value=float(max_value),
        bc_total=BC, bc_tile=bc_tile, chunks_per_core=chunks_per_core,
        needs_mask=needs_mask)

    def in_map(c, i):
        # Clamp so a phantom chunk (odd chunk count split over 2 cores)
        # re-reads the last real chunk; its contribution is masked in-kernel.
        return (jnp.minimum(c * chunks_per_core + i, chunks_total - 1), 0, 0)

    if num_cores > 1:
        # Real 2-core split of the HBM stream on v7x.
        dim_sem = (pltpu.CORE_PARALLEL, pltpu.ARBITRARY)
    else:
        dim_sem = ("arbitrary", "arbitrary")

    partials = pl.pallas_call(
        kernel,
        out_shape=jax.ShapeDtypeStruct((num_cores, H, W), jnp.float32),
        grid_spec=pltpu.PrefetchScalarGridSpec(
            num_scalar_prefetch=0,
            grid=(num_cores, chunks_per_core),
            in_specs=[pl.BlockSpec((bc_tile, H, W), in_map),
                      pl.BlockSpec((bc_tile, H, W), in_map)],
            out_specs=pl.BlockSpec((1, H, W), lambda c, i: (c, 0, 0)),
        ),
        compiler_params=pltpu.CompilerParams(
            dimension_semantics=dim_sem,
            vmem_limit_bytes=32 << 20),
    )(p3, t3)

    # Tiny XLA epilogue: positional center-crop of the per-core partial maps
    # (bit-identical to cropping in-kernel, since the accumulator is per-(h,w)),
    # then the mean over the cropped element count.
    cropped = partials[:, top:top + crop_h, left:left + crop_w]
    return jnp.sum(cropped) / count


if __name__ == "__main__":
    key = jax.random.PRNGKey(0)
    k1, k2 = jax.random.split(key)

    # Small shapes consistent with the module (NCHW).
    # Original RainNet uses 336x336 inputs cropped to 288; here 16x16 -> 8.
    B, C, H, W = 2, 4, 16, 16
    crop = 8
    pred = jax.random.uniform(k1, (B, C, H, W), dtype=jnp.float32)
    target = jax.random.uniform(k2, (B, C, H, W), dtype=jnp.float32)

    loss = weighted_loss(pred, target, crop_size=crop)
    loss = jax.block_until_ready(loss)

    # Pure-JAX reference of the exact PyTorch semantics.
    pc = center_crop(pred, crop, crop)
    tc = center_crop(target, crop, crop)
    ref = jnp.mean(jnp.abs(pc - tc) * jnp.clip(tc, MIN_VALUE, MAX_VALUE))
    assert jnp.allclose(loss, ref, rtol=1e-5, atol=1e-6), (loss, ref)

    print("KERNEL_OK")
</pallas_src>

<mosaic_0001>
module attributes {stable_mosaic.version = 11 : i64} {
  func.func @_weighted_loss_kernel(%arg0: i32, %arg1: i32, %arg2: memref<8x16x16xf32, #tpu.memory_space<vmem>>, %arg3: memref<8x16x16xf32, #tpu.memory_space<vmem>>, %arg4: memref<1x16x16xf32, #tpu.memory_space<vmem>>) attributes {dimension_semantics = [#tpu.dimension_semantics<arbitrary>, #tpu.dimension_semantics<arbitrary>], iteration_bounds = array<i64: 1, 1>, scalar_prefetch = 0 : i64, scratch_operands = 0 : i64, tpu.core_type = #tpu.core_type<tc>, window_params = [{transform_indices = @transform_0, window_bounds = array<i64: 8, 16, 16>}, {transform_indices = @transform_1, window_bounds = array<i64: 8, 16, 16>}, {transform_indices = @transform_2, window_bounds = array<i64: 1, 16, 16>}]} {
    %c0_i32 = arith.constant 0 : i32
    %0 = arith.cmpi eq, %arg1, %c0_i32 : i32
    %1 = arith.extui %0 : i1 to i32
    %c0_i32_0 = arith.constant 0 : i32
    %2 = arith.cmpi ne, %1, %c0_i32_0 : i32
    scf.if %2 {
      %cst_14 = arith.constant 0.000000e+00 : f32
      %17 = vector.broadcast %cst_14 : f32 to vector<1x16x16xf32>
      %c0_15 = arith.constant 0 : index
      %c0_16 = arith.constant 0 : index
      %c0_17 = arith.constant 0 : index
      %18 = vector.load %arg4[%c0_15, %c0_16, %c0_17] : memref<1x16x16xf32, #tpu.memory_space<vmem>>, vector<1x16x16xf32>
      tpu.vector_store %arg4[%c0_15, %c0_16, %c0_17], %17 {strides = array<i32>} : memref<1x16x16xf32, #tpu.memory_space<vmem>>, vector<1x16x16xf32>,
    } else {
    }
    %c0 = arith.constant 0 : index
    %c0_1 = arith.constant 0 : index
    %c0_2 = arith.constant 0 : index
    %3 = vector.load %arg2[%c0, %c0_1, %c0_2] : memref<8x16x16xf32, #tpu.memory_space<vmem>>, vector<8x16x16xf32>
    %c0_3 = arith.constant 0 : index
    %c0_4 = arith.constant 0 : index
    %c0_5 = arith.constant 0 : index
    %4 = vector.load %arg3[%c0_3, %c0_4, %c0_5] : memref<8x16x16xf32, #tpu.memory_space<vmem>>, vector<8x16x16xf32>
    %5 = arith.subf %3, %4 : vector<8x16x16xf32>
    %6 = math.absf %5 : vector<8x16x16xf32>
    %cst = arith.constant 0.0914153606 : f32
    %cst_6 = arith.constant 0.884989261 : f32
    %7 = vector.broadcast %cst : f32 to vector<8x16x16xf32>
    %8 = arith.maximumf %7, %4 : vector<8x16x16xf32>
    %9 = vector.broadcast %cst_6 : f32 to vector<8x16x16xf32>
    %10 = arith.minimumf %9, %8 : vector<8x16x16xf32>
    %11 = arith.mulf %6, %10 : vector<8x16x16xf32>
    %c0_7 = arith.constant 0 : index
    %c0_8 = arith.constant 0 : index
    %c0_9 = arith.constant 0 : index
    %12 = vector.load %arg4[%c0_7, %c0_8, %c0_9] : memref<1x16x16xf32, #tpu.memory_space<vmem>>, vector<1x16x16xf32>
    %cst_10 = arith.constant dense<0.000000e+00> : vector<16x16xf32>
    %13 = vector.multi_reduction <add>, %11, %cst_10 [0] : vector<8x16x16xf32> to vector<16x16xf32>
    %14 = vector.shape_cast %13 : vector<16x16xf32> to vector<1x16x16xf32>
    %15 = arith.addf %12, %14 : vector<1x16x16xf32>
    %c0_11 = arith.constant 0 : index
    %c0_12 = arith.constant 0 : index
    %c0_13 = arith.constant 0 : index
    %16 = vector.load %arg4[%c0_11, %c0_12, %c0_13] : memref<1x16x16xf32, #tpu.memory_space<vmem>>, vector<1x16x16xf32>
    tpu.vector_store %arg4[%c0_11, %c0_12, %c0_13], %15 {strides = array<i32>} : memref<1x16x16xf32, #tpu.memory_space<vmem>>, vector<1x16x16xf32>,
    return
  }
  func.func @transform_0(%arg0: i32, %arg1: i32) -> (i32, i32, i32) {
    %c1_i32 = arith.constant 1 : i32
    %0 = arith.muli %arg0, %c1_i32 : i32
    %1 = arith.addi %0, %arg1 : i32
    %c0_i32 = arith.constant 0 : i32
    %2 = arith.minsi %1, %c0_i32 : i32
    %c0_i32_0 = arith.constant 0 : i32
    %c0_i32_1 = arith.constant 0 : i32
    %c0_i32_2 = arith.constant 0 : i32
    return %2, %c0_i32_0, %c0_i32_1 : i32, i32, i32
  }
  func.func @transform_1(%arg0: i32, %arg1: i32) -> (i32, i32, i32) {
    %c1_i32 = arith.constant 1 : i32
    %0 = arith.muli %arg0, %c1_i32 : i32
    %1 = arith.addi %0, %arg1 : i32
    %c0_i32 = arith.constant 0 : i32
    %2 = arith.minsi %1, %c0_i32 : i32
    %c0_i32_0 = arith.constant 0 : i32
    %c0_i32_1 = arith.constant 0 : i32
    %c0_i32_2 = arith.constant 0 : i32
    return %2, %c0_i32_0, %c0_i32_1 : i32, i32, i32
  }
  func.func @transform_2(%arg0: i32, %arg1: i32) -> (i32, i32, i32) {
    %c0_i32 = arith.constant 0 : i32
    %c0_i32_0 = arith.constant 0 : i32
    %c0_i32_1 = arith.constant 0 : i32
    return %arg0, %c0_i32, %c0_i32_0 : i32, i32, i32
  }
}

</mosaic_0001>

<llo_original>
// kernel: tpu_custom_call.1
$region0: #{tpu_custom_call.1}
  #allocation0 [shape = 'u32[]', space=smem, size = 0x4, offset = 0x4, fixed_abs, tag = 'smem constant byte address 0x4 - core index']
  #allocation1 [shape = 'u32[72,128]{1,0:T(1,128)}', space=vmem, size = 0x9000, scoped, tag = 'internal scratch']
  %s0 = inlined_call_operand.hbm [shape: f32[8,16,16], index: 0, kind: input, shape index: {}]
  %s1 = inlined_call_operand.hbm [shape: f32[8,16,16], index: 1, kind: input, shape index: {}]
  %s2 = inlined_call_operand.hbm [shape: f32[1,16,16], index: 2, kind: output, shape index: {}]
  %s3 = sld [smem:[#allocation0]]
  $region30: #{tpu_custom_call.1} parent=0
    _
  %s5 = ssub.s32 1, %s3
  %s6 = scalar_select 0, %s5, %s3
  $region1: #{tpu_custom_call.1} parent=0
    #allocation2 [shape = 'u8[65536]{0}', space=vmem, size = 0x10000, scoped, tag = 'input window, operand 0, single buffered']
    #allocation3 [shape = 's32[1]{0}', space=sflag, size = 0x4, scoped, tag = 'scoped memory for tpu_custom_call.1']
    #allocation4 [shape = 's32[1]{0}', space=sflag, size = 0x4, scoped, tag = 'scoped memory for tpu_custom_call.1']
    #allocation5 [shape = 'u8[65536]{0}', space=vmem, size = 0x10000, scoped, tag = 'input window, operand 1, single buffered']
    #allocation6 [shape = 's32[1]{0}', space=sflag, size = 0x4, scoped, tag = 'scoped memory for tpu_custom_call.1']
    #allocation7 [shape = 'u8[8192]{0}', space=vmem, size = 0x2000, scoped, tag = 'output window, operand 0, single buffered']
    %7 = vsyncpa [#allocation3], 0
    %8 = vsyncpa [#allocation6], 0
    %9 = vsyncpa [#allocation4], 0
    // Predicated region
    $region2: #{tpu_custom_call.1} parent=1 // pred_check
      _
    $region3: #{tpu_custom_call.1} parent=1 // pred_check_branch
      %11 = sbr.rel (0) target = $region5
    $region4: #{tpu_custom_call.1} parent=1 // pred_region
      %s12 = sadd.s32 0, 0
      %p13 = scmp.lt.s32.totalorder %s12, 0
      %s14 = scalar_select %p13, %s12, 0
      %s15 = smul.u32 8, %s14
      %17 = vsyncadd [#allocation3], 0
      %s18 = smul.addr %s15, 2
      %s19 = smul.addr %s18, 8
      %s20 = scalar_lea.hbm %s0, %s19
      %s21 = sshll.u32 %s20, 4
      %s22 = int_to_ptr.hbm [resolvable:$true] %s21
      %s23 = sshll.u32 [#allocation2], 4
      %s24 = int_to_ptr.vmem [resolvable:$true] %s23
      %29 = dma.hbm_to_vmem [thread:$0]  %s22, 2048, %s24, [#allocation3], 128, 128, 8
    $region5: #{tpu_custom_call.1} parent=1 // pred_fallthru
      _
    // Predicated region
    $region6: #{tpu_custom_call.1} parent=1 // pred_check
      _
    $region7: #{tpu_custom_call.1} parent=1 // pred_check_branch
      %31 = sbr.rel (0) target = $region9
    $region8: #{tpu_custom_call.1} parent=1 // pred_region
      %s32 = sadd.s32 0, 0
      %p33 = scmp.lt.s32.totalorder %s32, 0
      %s34 = scalar_select %p33, %s32, 0
      %s35 = smul.u32 8, %s34
      %37 = vsyncadd [#allocation6], 0
      %s38 = smul.addr %s35, 2
      %s39 = smul.addr %s38, 8
      %s40 = scalar_lea.hbm %s1, %s39
      %s41 = sshll.u32 %s40, 4
      %s42 = int_to_ptr.hbm [resolvable:$true] %s41
      %s43 = sshll.u32 [#allocation5], 4
      %s44 = int_to_ptr.vmem [resolvable:$true] %s43
      %49 = dma.hbm_to_vmem [thread:$0]  %s42, 2048, %s44, [#allocation6], 128, 128, 8
    $region9: #{tpu_custom_call.1} parent=1 // pred_fallthru
      _
    // Predicated region
    $region10: #{tpu_custom_call.1} parent=1 // pred_check
      _
    $region11: #{tpu_custom_call.1} parent=1 // pred_check_branch
      %51 = sbr.rel (0) target = $region13
    $region12: #{tpu_custom_call.1} parent=1 // pred_region
      %53 = dma.done [#allocation3], 2048
    $region13: #{tpu_custom_call.1} parent=1 // pred_fallthru
      _
    // Predicated region
    $region14: #{tpu_custom_call.1} parent=1 // pred_check
      _
    $region15: #{tpu_custom_call.1} parent=1 // pred_check_branch
      %55 = sbr.rel (0) target = $region17
    $region16: #{tpu_custom_call.1} parent=1 // pred_region
      %57 = dma.done [#allocation6], 2048
    $region17: #{tpu_custom_call.1} parent=1 // pred_fallthru
      _
    %s58 = sadd.s32 0, 0
    %p59 = scmp.lt.s32.totalorder %s58, 0
    %s60 = scalar_select %p59, %s58, 0
    %s61 = smul.u32 8, %s60
    %s62 = sadd.s32 0, 0
    %p63 = scmp.lt.s32.totalorder %s62, 0
    %s64 = scalar_select %p63, %s62, 0
    %s65 = smul.u32 8, %s64
    %p66 = scmp.eq.s32.totalorder 0, 0
    // Predicated region
    $region18: #{tpu_custom_call.1} parent=1 // pred_check
      %p67 = pneg %p66
    $region19: #{tpu_custom_call.1} parent=1 // pred_check_branch
      %69 = sbr.rel (%p67) target = $region21
    $region20: #{tpu_custom_call.1} parent=1 // pred_region
      %vm70 = vcmask 130048
      %71 = vst.msk [vmem:[#allocation7] sm:$0xff] %vm70, 0.0
      %72 = vst.msk [vmem:[#allocation7 + $0x8] sm:$0xff] %vm70, 0.0
    $region21: #{tpu_custom_call.1} parent=1 // pred_fallthru
      _
    %v73 = vld [vmem:[#allocation2] sm:$0xff]
    %v74 = vld [vmem:[#allocation2 + $0x8] sm:$0xff]
    %v75 = vld [vmem:[#allocation2 + $0x10] sm:$0xff]
    %v76 = vld [vmem:[#allocation2 + $0x18] sm:$0xff]
    %v77 = vld [vmem:[#allocation2 + $0x20] sm:$0xff]
    %v78 = vld [vmem:[#allocation2 + $0x28] sm:$0xff]
    %v79 = vld [vmem:[#allocation2 + $0x30] sm:$0xff]
    %v80 = vld [vmem:[#allocation2 + $0x38] sm:$0xff]
    %v81 = vld [vmem:[#allocation2 + $0x40] sm:$0xff]
    %v82 = vld [vmem:[#allocation2 + $0x48] sm:$0xff]
    %v83 = vld [vmem:[#allocation2 + $0x50] sm:$0xff]
    %v84 = vld [vmem:[#allocation2 + $0x58] sm:$0xff]
    %v85 = vld [vmem:[#allocation2 + $0x60] sm:$0xff]
    %v86 = vld [vmem:[#allocation2 + $0x68] sm:$0xff]
    %v87 = vld [vmem:[#allocation2 + $0x70] sm:$0xff]
    %v88 = vld [vmem:[#allocation2 + $0x78] sm:$0xff]
    %v89 = vld [vmem:[#allocation5] sm:$0xff]
    %v90 = vld [vmem:[#allocation5 + $0x8] sm:$0xff]
    %v91 = vld [vmem:[#allocation5 + $0x10] sm:$0xff]
    %v92 = vld [vmem:[#allocation5 + $0x18] sm:$0xff]
    %v93 = vld [vmem:[#allocation5 + $0x20] sm:$0xff]
    %v94 = vld [vmem:[#allocation5 + $0x28] sm:$0xff]
    %v95 = vld [vmem:[#allocation5 + $0x30] sm:$0xff]
    %v96 = vld [vmem:[#allocation5 + $0x38] sm:$0xff]
    %v97 = vld [vmem:[#allocation5 + $0x40] sm:$0xff]
    %v98 = vld [vmem:[#allocation5 + $0x48] sm:$0xff]
    %v99 = vld [vmem:[#allocation5 + $0x50] sm:$0xff]
    %v100 = vld [vmem:[#allocation5 + $0x58] sm:$0xff]
    %v101 = vld [vmem:[#allocation5 + $0x60] sm:$0xff]
    %v102 = vld [vmem:[#allocation5 + $0x68] sm:$0xff]
    %v103 = vld [vmem:[#allocation5 + $0x70] sm:$0xff]
    %v104 = vld [vmem:[#allocation5 + $0x78] sm:$0xff]
    %v105 = vsub.f32 %v73, %v89
    %v106 = vsub.f32 %v74, %v90
    %v107 = vsub.f32 %v75, %v91
    %v108 = vsub.f32 %v76, %v92
    %v109 = vsub.f32 %v77, %v93
    %v110 = vsub.f32 %v78, %v94
    %v111 = vsub.f32 %v79, %v95
    %v112 = vsub.f32 %v80, %v96
    %v113 = vsub.f32 %v81, %v97
    %v114 = vsub.f32 %v82, %v98
    %v115 = vsub.f32 %v83, %v99
    %v116 = vsub.f32 %v84, %v100
    %v117 = vsub.f32 %v85, %v101
    %v118 = vsub.f32 %v86, %v102
    %v119 = vsub.f32 %v87, %v103
    %v120 = vsub.f32 %v88, %v104
    %v121 = vand.u32 2147483647, %v105
    %v122 = vand.u32 2147483647, %v106
    %v123 = vand.u32 2147483647, %v107
    %v124 = vand.u32 2147483647, %v108
    %v125 = vand.u32 2147483647, %v109
    %v126 = vand.u32 2147483647, %v110
    %v127 = vand.u32 2147483647, %v111
    %v128 = vand.u32 2147483647, %v112
    %v129 = vand.u32 2147483647, %v113
    %v130 = vand.u32 2147483647, %v114
    %v131 = vand.u32 2147483647, %v115
    %v132 = vand.u32 2147483647, %v116
    %v133 = vand.u32 2147483647, %v117
    %v134 = vand.u32 2147483647, %v118
    %v135 = vand.u32 2147483647, %v119
    %v136 = vand.u32 2147483647, %v120
    %v137 = vmax.f32 %v89, 0.09141536
    %v138 = vmax.f32 %v90, 0.09141536
    %v139 = vmax.f32 %v91, 0.09141536
    %v140 = vmax.f32 %v92, 0.09141536
    %v141 = vmax.f32 %v93, 0.09141536
    %v142 = vmax.f32 %v94, 0.09141536
    %v143 = vmax.f32 %v95, 0.09141536
    %v144 = vmax.f32 %v96, 0.09141536
    %v145 = vmax.f32 %v97, 0.09141536
    %v146 = vmax.f32 %v98, 0.09141536
    %v147 = vmax.f32 %v99, 0.09141536
    %v148 = vmax.f32 %v100, 0.09141536
    %v149 = vmax.f32 %v101, 0.09141536
    %v150 = vmax.f32 %v102, 0.09141536
    %v151 = vmax.f32 %v103, 0.09141536
    %v152 = vmax.f32 %v104, 0.09141536
    %v153 = vmin.f32 %v137, 0.88498926
    %v154 = vmin.f32 %v138, 0.88498926
    %v155 = vmin.f32 %v139, 0.88498926
    %v156 = vmin.f32 %v140, 0.88498926
    %v157 = vmin.f32 %v141, 0.88498926
    %v158 = vmin.f32 %v142, 0.88498926
    %v159 = vmin.f32 %v143, 0.88498926
    %v160 = vmin.f32 %v144, 0.88498926
    %v161 = vmin.f32 %v145, 0.88498926
    %v162 = vmin.f32 %v146, 0.88498926
    %v163 = vmin.f32 %v147, 0.88498926
    %v164 = vmin.f32 %v148, 0.88498926
    %v165 = vmin.f32 %v149, 0.88498926
    %v166 = vmin.f32 %v150, 0.88498926
    %v167 = vmin.f32 %v151, 0.88498926
    %v168 = vmin.f32 %v152, 0.88498926
    %v169 = vmul.f32 %v121, %v153
    %v170 = vmul.f32 %v122, %v154
    %v171 = vmul.f32 %v123, %v155
    %v172 = vmul.f32 %v124, %v156
    %v173 = vmul.f32 %v125, %v157
    %v174 = vmul.f32 %v126, %v158
    %v175 = vmul.f32 %v127, %v159
    %v176 = vmul.f32 %v128, %v160
    %v177 = vmul.f32 %v129, %v161
    %v178 = vmul.f32 %v130, %v162
    %v179 = vmul.f32 %v131, %v163
    %v180 = vmul.f32 %v132, %v164
    %v181 = vmul.f32 %v133, %v165
    %v182 = vmul.f32 %v134, %v166
    %v183 = vmul.f32 %v135, %v167
    %v184 = vmul.f32 %v136, %v168
    %v185 = vld [vmem:[#allocation7] sm:$0xff]
    %v186 = vld [vmem:[#allocation7 + $0x8] sm:$0xff]
    %vm187 = vcmask 130048
    %v188 = vsel %vm187, %v169, 0.0
    %v189 = vsel %vm187, %v171, 0.0
    %v190 = vadd.f32 %v188, %v189
    %v191 = vsel %vm187, %v173, 0.0
    %v192 = vadd.f32 %v190, %v191
    %v193 = vsel %vm187, %v175, 0.0
    %v194 = vadd.f32 %v192, %v193
    %v195 = vsel %vm187, %v177, 0.0
    %v196 = vadd.f32 %v194, %v195
    %v197 = vsel %vm187, %v179, 0.0
    %v198 = vadd.f32 %v196, %v197
    %v199 = vsel %vm187, %v181, 0.0
    %v200 = vadd.f32 %v198, %v199
    %v201 = vsel %vm187, %v183, 0.0
    %v202 = vadd.f32 %v200, %v201
    %v203 = vsel %vm187, %v170, 0.0
    %v204 = vsel %vm187, %v172, 0.0
    %v205 = vadd.f32 %v203, %v204
    %v206 = vsel %vm187, %v174, 0.0
    %v207 = vadd.f32 %v205, %v206
    %v208 = vsel %vm187, %v176, 0.0
    %v209 = vadd.f32 %v207, %v208
    %v210 = vsel %vm187, %v178, 0.0
    %v211 = vadd.f32 %v209, %v210
    %v212 = vsel %vm187, %v180, 0.0
    %v213 = vadd.f32 %v211, %v212
    %v214 = vsel %vm187, %v182, 0.0
    %v215 = vadd.f32 %v213, %v214
    %v216 = vsel %vm187, %v184, 0.0
    %v217 = vadd.f32 %v215, %v216
    %v218 = vadd.f32 %v185, %v202
    %v219 = vadd.f32 %v186, %v217
    %220 = vst.msk [vmem:[#allocation7] sm:$0xff] %vm187, %v218
    %221 = vst.msk [vmem:[#allocation7 + $0x8] sm:$0xff] %vm187, %v219
    // Predicated region
    $region22: #{tpu_custom_call.1} parent=1 // pred_check
      _
    $region23: #{tpu_custom_call.1} parent=1 // pred_check_branch
      %223 = sbr.rel (0) target = $region25
    $region24: #{tpu_custom_call.1} parent=1 // pred_region
      %225 = vsyncadd [#allocation4], 0
      %s226 = sshll.u32 [#allocation7], 4
      %s227 = int_to_ptr.vmem [resolvable:$true] %s226
      %s228 = sshll.u32 %s2, 4
      %s229 = int_to_ptr.hbm [resolvable:$true] %s228
      %234 = dma.vmem_to_hbm [thread:$0]  %s227, 256, %s229, [#allocation4], 128, 128, 8
    $region25: #{tpu_custom_call.1} parent=1 // pred_fallthru
      _
    // Predicated region
    $region26: #{tpu_custom_call.1} parent=1 // pred_check
      _
    $region27: #{tpu_custom_call.1} parent=1 // pred_check_branch
      %236 = sbr.rel (0) target = $region29
    $region28: #{tpu_custom_call.1} parent=1 // pred_region
      %238 = dma.done [#allocation4], 256
    $region29: #{tpu_custom_call.1} parent=1 // pred_fallthru
      _
    %239 = vsyncpa [#allocation3], 1
    %240 = vsyncpa [#allocation6], 1
    %241 = vsyncpa [#allocation4], 1

</llo_original>
